<compile_context>
chip_gen: v5e
topology: v5e:2x2
jax: 0.10.0
libtpu: 0.0.40
codegen_flags: <defaults>
</compile_context>

<pallas_src>
import math
from functools import partial

import jax
import jax.numpy as jnp
from jax.experimental import pallas as pl
from jax.experimental.pallas import tpu as pltpu


# Tile targets (f32): 2048*512*4 = 4 MiB weight tile, 8 MiB double-buffered.
_TK_TARGET = 2048
_TN_TARGET = 512
_X_RESIDENT_BYTES = 2 * 1024 * 1024    # keep x resident in VMEM below this
_VMEM_LIMIT_BYTES = 32 * 1024 * 1024   # safe on v5e/v6e/v7x, above v5e default


def _round_up(v, m):
    return ((v + m - 1) // m) * m


def _padded_dim(dim, target):
    """Pad a dim to a multiple of 128 iff it needs tiling but isn't aligned."""
    if dim <= target or dim % 128 == 0:
        return dim
    return _round_up(dim, 128)


def _pick_tile(dim, target, align=128):
    """Largest tile <= target that divides dim and is a multiple of `align`.
    Falls back to the full dim (only reachable for dims `_padded_dim` left
    untouched, where the full dim is a legal block)."""
    if dim <= target:
        return dim
    t = (target // align) * align
    while t >= align:
        if dim % t == 0:
            return t
        t -= align
    return dim


def _make_kernel(tk, x_resident):
    def kernel(x_ref, w_ref, b_ref, o_ref, acc_ref):
        k = pl.program_id(1)

        @pl.when(k == 0)
        def _init():
            acc_ref[...] = jnp.zeros_like(acc_ref)

        if x_resident:
            # x lives in VMEM as a single (B, K) block; slice the current
            # 128-aligned K chunk for this reduction step.
            start = pl.multiple_of(k * tk, tk)
            x_blk = x_ref[:, pl.ds(start, tk)]
        else:
            x_blk = x_ref[...]

        # Single pre-masked weight stream; mask was fused in the wrapper.
        acc_ref[...] += jnp.dot(x_blk, w_ref[...],
                                preferred_element_type=jnp.float32)

        @pl.when(k == pl.num_programs(1) - 1)
        def _finalize():
            o_ref[...] = (acc_ref[...] + b_ref[...]).astype(o_ref.dtype)

    return kernel


def prepare_sparse_linear_params(weight, mask, bias=None, *,
                                 weight_dtype=jnp.float32):
    """One-time parameter prep; do NOT redo per forward call.

    Fuses the 0/1 sparsity mask into the weight, transposes to (K, N) so the
    kernel does a plain MXU contraction with a lane-dense N output, zero-pads
    awkward dims for bounded 128-aligned tiling, and optionally casts the
    dominant weight stream to bf16.  Bias stays f32 (tiny stream, exact add).
    """
    N, K = weight.shape
    wm_t = (weight * mask).T.astype(weight_dtype)            # (K, N)
    b = jnp.zeros((N,), jnp.float32) if bias is None else bias
    b2d = b.reshape(1, N).astype(jnp.float32)

    K_p = _padded_dim(K, _TK_TARGET)
    N_p = _padded_dim(N, _TN_TARGET)
    if (K_p, N_p) != (K, N):
        wm_t = jnp.pad(wm_t, ((0, K_p - K), (0, N_p - N)))
        b2d = jnp.pad(b2d, ((0, 0), (0, N_p - N)))
    return wm_t, b2d


@partial(jax.jit, static_argnames=("out_features",))
def sparse_linear_fused(x, wm_t, b2d, *, out_features):
    """y = x @ W_masked.T + b, with W_masked pre-fused / transposed / padded
    by `prepare_sparse_linear_params`.  x: (..., in_features)."""
    orig_dtype = x.dtype
    lead = x.shape[:-1]
    K = x.shape[-1]
    x2 = x.reshape(-1, K)
    B = x2.shape[0]

    K_p, N_p = wm_t.shape
    if K_p != K:
        x2 = jnp.pad(x2, ((0, 0), (0, K_p - K)))
    if wm_t.dtype != x2.dtype:
        # bf16 weight-stream option: feed the MXU matching dtypes.
        x2 = x2.astype(wm_t.dtype)

    tn = _pick_tile(N_p, _TN_TARGET)
    tk = _pick_tile(K_p, _TK_TARGET)
    n_blocks = N_p // tn
    k_blocks = K_p // tk

    x_bytes = B * K_p * x2.dtype.itemsize
    x_resident = (k_blocks > 1) and (x_bytes <= _X_RESIDENT_BYTES)

    if x_resident:
        x_spec = pl.BlockSpec((B, K_p), lambda n, k: (0, 0))   # fetched once
    else:
        x_spec = pl.BlockSpec((B, tk), lambda n, k: (0, k))

    # Each weight byte is read exactly once; x is read once when resident (or
    # when K fits a single block), otherwise once per N tile.
    x_passes = 1 if (x_resident or k_blocks == 1) else n_blocks
    cost = pl.CostEstimate(
        flops=2 * B * N_p * K_p + B * N_p,
        transcendentals=0,
        bytes_accessed=(x_passes * x_bytes
                        + wm_t.size * wm_t.dtype.itemsize
                        + b2d.size * b2d.dtype.itemsize
                        + B * N_p * orig_dtype.itemsize),
    )

    y = pl.pallas_call(
        _make_kernel(tk, x_resident),
        out_shape=jax.ShapeDtypeStruct((B, N_p), orig_dtype),
        grid_spec=pltpu.PrefetchScalarGridSpec(
            num_scalar_prefetch=0,
            grid=(n_blocks, k_blocks),            # N outer (parallel), K inner
            in_specs=[
                x_spec,                                         # x
                pl.BlockSpec((tk, tn), lambda n, k: (k, n)),    # (W*M)^T
                pl.BlockSpec((1, tn), lambda n, k: (0, n)),     # bias
            ],
            out_specs=pl.BlockSpec((B, tn), lambda n, k: (0, n)),
            scratch_shapes=[pltpu.VMEM((B, tn), jnp.float32)],
        ),
        compiler_params=pltpu.CompilerParams(
            dimension_semantics=("parallel", "arbitrary"),
            vmem_limit_bytes=_VMEM_LIMIT_BYTES,
        ),
        cost_estimate=cost,
    )(x2, wm_t, b2d)

    if N_p != out_features:
        y = y[:, :out_features]
    return y.reshape(*lead, out_features)


def sparse_linear(x, weight, mask, bias=None, *, weight_dtype=jnp.float32):
    """One-shot convenience wrapper matching SparseLinear.forward().  For
    repeated calls with fixed weights, call prepare_sparse_linear_params once
    and reuse its outputs with sparse_linear_fused."""
    wm_t, b2d = prepare_sparse_linear_params(weight, mask, bias,
                                             weight_dtype=weight_dtype)
    return sparse_linear_fused(x, wm_t, b2d, out_features=weight.shape[0])


def init_params(key, in_features, out_features):
    """Deterministic re-implementation of SparseLinear.reset_parameters()."""
    kw, kb, km = jax.random.split(key, 3)
    fan_in = in_features
    # kaiming_uniform_(a=sqrt(5)): bound = sqrt(6 / ((1 + 5) * fan_in)).
    w_bound = math.sqrt(6.0 / (6.0 * fan_in))
    weight = jax.random.uniform(
        kw, (out_features, in_features), jnp.float32, -w_bound, w_bound)
    b_bound = 1.0 / math.sqrt(fan_in)
    bias = jax.random.uniform(kb, (out_features,), jnp.float32, -b_bound, b_bound)
    # Fixed binary sparsity mask, ~50% density.
    mask = (jax.random.uniform(km, (out_features, in_features)) > 0.5).astype(
        jnp.float32)
    return weight, mask, bias


if __name__ == "__main__":
    key = jax.random.PRNGKey(0)

    # --- Case 1: small shapes (single-block path, grid=(1,1)) -------------
    batch, in_f, out_f = 8, 32, 32
    kx, kp = jax.random.split(key)
    x = jax.random.normal(kx, (batch, in_f), jnp.float32)
    weight, mask, bias = init_params(kp, in_f, out_f)
    y = jax.block_until_ready(sparse_linear(x, weight, mask, bias))
    y_ref = x @ (weight * mask).T + bias
    assert y.shape == (batch, out_f)
    assert jnp.allclose(y, y_ref, atol=1e-5, rtol=1e-5), "mismatch (small)"

    # --- Case 2: tiled path with K accumulation + resident x --------------
    # grid = (1024/512, 4096/2048) = (2, 2); 4 MiB weight tiles.
    batch2, in2, out2 = 8, 4096, 1024
    kx2, kp2 = jax.random.split(jax.random.PRNGKey(1))
    x2 = jax.random.normal(kx2, (batch2, in2), jnp.float32)
    w2, m2, b2 = init_params(kp2, in2, out2)
    wm2, bb2 = prepare_sparse_linear_params(w2, m2, b2)       # hoisted prep
    y2 = jax.block_until_ready(
        sparse_linear_fused(x2, wm2, bb2, out_features=out2))
    y2_ref = x2 @ (w2 * m2).T + b2
    assert y2.shape == (batch2, out2)
    assert jnp.allclose(y2, y2_ref, atol=1e-2, rtol=1e-2), "mismatch (tiled)"

    # --- Case 3: awkward dims exercising the zero-pad path ----------------
    # in=2200 (> tk target, not 128-aligned) -> padded to 2304, tk=1152.
    batch3, in3, out3 = 4, 2200, 384
    kx3, kp3 = jax.random.split(jax.random.PRNGKey(2))
    x3 = jax.random.normal(kx3, (batch3, in3), jnp.float32)
    w3, m3, b3 = init_params(kp3, in3, out3)
    wm3, bb3 = prepare_sparse_linear_params(w3, m3, b3)
    y3 = jax.block_until_ready(
        sparse_linear_fused(x3, wm3, bb3, out_features=out3))
    y3_ref = x3 @ (w3 * m3).T + b3
    assert y3.shape == (batch3, out3)
    assert jnp.allclose(y3, y3_ref, atol=1e-2, rtol=1e-2), "mismatch (padded)"

    print("KERNEL_OK")
</pallas_src>

<mosaic_0001>
module attributes {stable_mosaic.version = 11 : i64} {
  func.func @kernel(%arg0: i32, %arg1: i32, %arg2: memref<8x32xf32, #tpu.memory_space<vmem>>, %arg3: memref<32x32xf32, #tpu.memory_space<vmem>>, %arg4: memref<1x32xf32, #tpu.memory_space<vmem>>, %arg5: memref<8x32xf32, #tpu.memory_space<vmem>>, %arg6: memref<8x32xf32, #tpu.memory_space<vmem>>) attributes {dimension_semantics = [#tpu.dimension_semantics<parallel>, #tpu.dimension_semantics<arbitrary>], iteration_bounds = array<i64: 1, 1>, scalar_prefetch = 0 : i64, scratch_operands = 1 : i64, tpu.core_type = #tpu.core_type<tc>, window_params = [{transform_indices = @transform_0, window_bounds = array<i64: 8, 32>}, {transform_indices = @transform_1, window_bounds = array<i64: 32, 32>}, {transform_indices = @transform_2, window_bounds = array<i64: 1, 32>}, {transform_indices = @transform_3, window_bounds = array<i64: 8, 32>}]} {
    %c0_i32 = arith.constant 0 : i32
    %0 = arith.cmpi eq, %arg1, %c0_i32 : i32
    %1 = arith.extui %0 : i1 to i32
    %c0_i32_0 = arith.constant 0 : i32
    %2 = arith.cmpi ne, %1, %c0_i32_0 : i32
    scf.if %2 {
      %cst_10 = arith.constant 0.000000e+00 : f32
      %12 = vector.broadcast %cst_10 : f32 to vector<8x32xf32>
      %c0_11 = arith.constant 0 : index
      %c0_12 = arith.constant 0 : index
      %13 = vector.load %arg6[%c0_11, %c0_12] : memref<8x32xf32, #tpu.memory_space<vmem>>, vector<8x32xf32>
      tpu.vector_store %arg6[%c0_11, %c0_12], %12 {strides = array<i32>} : memref<8x32xf32, #tpu.memory_space<vmem>>, vector<8x32xf32>,
    } else {
    }
    %c0 = arith.constant 0 : index
    %c0_1 = arith.constant 0 : index
    %3 = vector.load %arg2[%c0, %c0_1] : memref<8x32xf32, #tpu.memory_space<vmem>>, vector<8x32xf32>
    %c0_2 = arith.constant 0 : index
    %c0_3 = arith.constant 0 : index
    %4 = vector.load %arg6[%c0_2, %c0_3] : memref<8x32xf32, #tpu.memory_space<vmem>>, vector<8x32xf32>
    %c0_4 = arith.constant 0 : index
    %c0_5 = arith.constant 0 : index
    %5 = vector.load %arg3[%c0_4, %c0_5] : memref<32x32xf32, #tpu.memory_space<vmem>>, vector<32x32xf32>
    %cst = arith.constant dense<0.000000e+00> : vector<8x32xf32>
    %6 = tpu.matmul %3, %5, %cst {dimension_numbers = #tpu.dot_dimension_numbers<[1], [0], [0], [1], [0, 0, 1, 1], [], []>} : vector<8x32xf32>, vector<32x32xf32>, vector<8x32xf32> -> vector<8x32xf32>
    %7 = arith.addf %4, %6 : vector<8x32xf32>
    %c0_6 = arith.constant 0 : index
    %c0_7 = arith.constant 0 : index
    %8 = vector.load %arg6[%c0_6, %c0_7] : memref<8x32xf32, #tpu.memory_space<vmem>>, vector<8x32xf32>
    tpu.vector_store %arg6[%c0_6, %c0_7], %7 {strides = array<i32>} : memref<8x32xf32, #tpu.memory_space<vmem>>, vector<8x32xf32>,
    %c0_i32_8 = arith.constant 0 : i32
    %9 = arith.cmpi eq, %arg1, %c0_i32_8 : i32
    %10 = arith.extui %9 : i1 to i32
    %c0_i32_9 = arith.constant 0 : i32
    %11 = arith.cmpi ne, %10, %c0_i32_9 : i32
    scf.if %11 {
      %c0_10 = arith.constant 0 : index
      %c0_11 = arith.constant 0 : index
      %12 = vector.load %arg6[%c0_10, %c0_11] : memref<8x32xf32, #tpu.memory_space<vmem>>, vector<8x32xf32>
      %c0_12 = arith.constant 0 : index
      %c0_13 = arith.constant 0 : index
      %13 = vector.load %arg4[%c0_12, %c0_13] : memref<1x32xf32, #tpu.memory_space<vmem>>, vector<1x32xf32>
      %14 = vector.broadcast %13 : vector<1x32xf32> to vector<8x32xf32>
      %15 = arith.addf %12, %14 : vector<8x32xf32>
      %c0_14 = arith.constant 0 : index
      %c0_15 = arith.constant 0 : index
      %16 = vector.load %arg5[%c0_14, %c0_15] : memref<8x32xf32, #tpu.memory_space<vmem>>, vector<8x32xf32>
      tpu.vector_store %arg5[%c0_14, %c0_15], %15 {strides = array<i32>} : memref<8x32xf32, #tpu.memory_space<vmem>>, vector<8x32xf32>,
    } else {
    }
    return
  }
  func.func @transform_0(%arg0: i32, %arg1: i32) -> (i32, i32) {
    %c0_i32 = arith.constant 0 : i32
    %c0_i32_0 = arith.constant 0 : i32
    return %c0_i32, %arg1 : i32, i32
  }
  func.func @transform_1(%arg0: i32, %arg1: i32) -> (i32, i32) {
    %c0_i32 = arith.constant 0 : i32
    return %arg1, %arg0 : i32, i32
  }
  func.func @transform_2(%arg0: i32, %arg1: i32) -> (i32, i32) {
    %c0_i32 = arith.constant 0 : i32
    %c0_i32_0 = arith.constant 0 : i32
    return %c0_i32, %arg0 : i32, i32
  }
  func.func @transform_3(%arg0: i32, %arg1: i32) -> (i32, i32) {
    %c0_i32 = arith.constant 0 : i32
    %c0_i32_0 = arith.constant 0 : i32
    return %c0_i32, %arg0 : i32, i32
  }
}

</mosaic_0001>

<llo_original>
// kernel: sparse_linear_fused.1
$region0: #{sparse_linear_fused.1}
  #allocation0 [shape = 'u32[]', space=smem, size = 0x4, offset = 0x4, fixed_abs, tag = 'smem constant byte address 0x4 - core index']
  #allocation1 [shape = 'u32[72,128]{1,0:T(1,128)}', space=vmem, size = 0x9000, scoped, tag = 'internal scratch']
  #allocation2 [shape = 'f32[8,32]{1,0:T(8,128)}', space=vmem, size = 0x1000, scoped, tag = 'scratch operand']
  %s0 = inlined_call_operand.hbm [shape: f32[8,32], index: 0, kind: input, shape index: {}]
  %s1 = inlined_call_operand.hbm [shape: f32[32,32], index: 1, kind: input, shape index: {}]
  %s2 = inlined_call_operand.vmem [shape: f32[1,32], index: 2, kind: input, shape index: {}]
  %s3 = inlined_call_operand.hbm [shape: f32[8,32], index: 3, kind: output, shape index: {}]
  %s4 = sld [smem:[#allocation0]]
  $region38: #{sparse_linear_fused.1} parent=0
    _
  %s6 = ssub.s32 1, %s4
  %s7 = scalar_select 0, %s6, %s4
  $region1: #{sparse_linear_fused.1} parent=0
    #allocation3 [shape = 'u8[4096]{0}', space=vmem, size = 0x1000, scoped, tag = 'input window, operand 0, single buffered']
    #allocation4 [shape = 's32[1]{0}', space=sflag, size = 0x4, scoped, tag = 'scoped memory for sparse_linear_fused.1']
    #allocation5 [shape = 's32[1]{0}', space=sflag, size = 0x4, scoped, tag = 'scoped memory for sparse_linear_fused.1']
    #allocation6 [shape = 'u8[16384]{0}', space=vmem, size = 0x4000, scoped, tag = 'input window, operand 1, single buffered']
    #allocation7 [shape = 's32[1]{0}', space=sflag, size = 0x4, scoped, tag = 'scoped memory for sparse_linear_fused.1']
    #allocation8 [shape = 'u8[4096]{0}', space=vmem, size = 0x1000, scoped, tag = 'output window, operand 0, single buffered']
    %8 = vsyncpa [#allocation4], 0
    %9 = vsyncpa [#allocation7], 0
    %10 = vsyncpa [#allocation5], 0
    // Predicated region
    $region2: #{sparse_linear_fused.1} parent=1 // pred_check
      _
    $region3: #{sparse_linear_fused.1} parent=1 // pred_check_branch
      %12 = sbr.rel (0) target = $region5
    $region4: #{sparse_linear_fused.1} parent=1 // pred_region
      %14 = vsyncadd [#allocation4], 0
      %s16 = sshll.u32 %s0, 4
      %s17 = int_to_ptr.hbm [resolvable:$true] %s16
      %s18 = sshll.u32 [#allocation3], 4
      %s19 = int_to_ptr.vmem [resolvable:$true] %s18
      %21 = dma.hbm_to_vmem [thread:$0]  %s17, 128, %s19, [#allocation4]
    $region5: #{sparse_linear_fused.1} parent=1 // pred_fallthru
      _
    // Predicated region
    $region6: #{sparse_linear_fused.1} parent=1 // pred_check
      _
    $region7: #{sparse_linear_fused.1} parent=1 // pred_check_branch
      %23 = sbr.rel (0) target = $region9
    $region8: #{sparse_linear_fused.1} parent=1 // pred_region
      %25 = vsyncadd [#allocation7], 0
      %s26 = sshll.u32 %s1, 4
      %s27 = int_to_ptr.hbm [resolvable:$true] %s26
      %s28 = sshll.u32 [#allocation6], 4
      %s29 = int_to_ptr.vmem [resolvable:$true] %s28
      %34 = dma.hbm_to_vmem [thread:$0]  %s27, 512, %s29, [#allocation7], 128, 128, 8
    $region9: #{sparse_linear_fused.1} parent=1 // pred_fallthru
      _
    // Predicated region
    $region10: #{sparse_linear_fused.1} parent=1 // pred_check
      _
    $region11: #{sparse_linear_fused.1} parent=1 // pred_check_branch
      %36 = sbr.rel (0) target = $region13
    $region12: #{sparse_linear_fused.1} parent=1 // pred_region
      _
    $region13: #{sparse_linear_fused.1} parent=1 // pred_fallthru
      _
    // Predicated region
    $region14: #{sparse_linear_fused.1} parent=1 // pred_check
      _
    $region15: #{sparse_linear_fused.1} parent=1 // pred_check_branch
      %38 = sbr.rel (0) target = $region17
    $region16: #{sparse_linear_fused.1} parent=1 // pred_region
      %40 = dma.done [#allocation4], 128
    $region17: #{sparse_linear_fused.1} parent=1 // pred_fallthru
      _
    // Predicated region
    $region18: #{sparse_linear_fused.1} parent=1 // pred_check
      _
    $region19: #{sparse_linear_fused.1} parent=1 // pred_check_branch
      %42 = sbr.rel (0) target = $region21
    $region20: #{sparse_linear_fused.1} parent=1 // pred_region
      %44 = dma.done [#allocation7], 512
    $region21: #{sparse_linear_fused.1} parent=1 // pred_fallthru
      _
    %p45 = scmp.eq.s32.totalorder 0, 0
    // Predicated region
    $region22: #{sparse_linear_fused.1} parent=1 // pred_check
      %p46 = pneg %p45
    $region23: #{sparse_linear_fused.1} parent=1 // pred_check_branch
      %48 = sbr.rel (%p46) target = $region25
    $region24: #{sparse_linear_fused.1} parent=1 // pred_region
      %vm49 = vcmask 261120
      %50 = vst.msk [vmem:[#allocation2] sm:$0xff] %vm49, 0.0
    $region25: #{sparse_linear_fused.1} parent=1 // pred_fallthru
      _
    %v51 = vld [vmem:[#allocation3] sm:$0xff]
    %v52 = vld [vmem:[#allocation2] sm:$0xff]
    %v53 = vld [vmem:[#allocation6] sm:$0xff]
    %v54 = vld [vmem:[#allocation6 + $0x8] sm:$0xff]
    %v55 = vld [vmem:[#allocation6 + $0x10] sm:$0xff]
    %v56 = vld [vmem:[#allocation6 + $0x18] sm:$0xff]
    %vm57 = vcmask 261120
    %v59 = vsel %vm57, %v51, 0
    %61 = vmatpush.msra.mxu0 0.0
    %62 = vmatpush.msra.mxu0 0.0
    %63 = vmatpush.msra.mxu0 0.0
    %64 = vmatpush.msra.mxu0 0.0
    %65 = vmatpush.msra.mxu0 0.0
    %66 = vmatpush.msra.mxu0 0.0
    %67 = vmatpush.msra.mxu0 0.0
    %68 = vmatpush.msra.mxu0 0.0
    %69 = vmatpush.msra.mxu0 0.0
    %70 = vmatpush.msra.mxu0 0.0
    %71 = vmatpush.msra.mxu0 0.0
    %72 = vmatpush.msra.mxu0 0.0
    %73 = vmatpush.msra.mxu0 %v56
    %74 = vmatpush.msra.mxu0 %v55
    %75 = vmatpush.msra.mxu0 %v54
    %76 = vmatpush.msra.mxu0 %v53
    %77 = vmatmul.f32.gmra.mxu0 %v59
    %v78 = vpop.f32.mrf.mxu0
    %v79 = vadd.f32 0.0, %v78
    %80 = vdwg.mxu0
    %v81 = vadd.f32 %v52, %v79
    %82 = vst.msk [vmem:[#allocation2] sm:$0xff] %vm57, %v81
    // Predicated region
    $region26: #{sparse_linear_fused.1} parent=1 // pred_check
      %p83 = pneg %p45
    $region27: #{sparse_linear_fused.1} parent=1 // pred_check_branch
      %85 = sbr.rel (%p83) target = $region29
    $region28: #{sparse_linear_fused.1} parent=1 // pred_region
      %v86 = vld [vmem:[#allocation2] sm:$0xff]
      %v87 = vld [vmem:[%s2] sm:$0x1]
      %v89 = vperm.slane %v87, 0
      %v91 = vadd.f32 %v86, %v89
      %92 = vst.msk [vmem:[#allocation8] sm:$0xff] %vm57, %v91
    $region29: #{sparse_linear_fused.1} parent=1 // pred_fallthru
      _
    // Predicated region
    $region30: #{sparse_linear_fused.1} parent=1 // pred_check
      _
    $region31: #{sparse_linear_fused.1} parent=1 // pred_check_branch
      %94 = sbr.rel (0) target = $region33
    $region32: #{sparse_linear_fused.1} parent=1 // pred_region
      %96 = vsyncadd [#allocation5], 0
      %s98 = sshll.u32 [#allocation8], 4
      %s99 = int_to_ptr.vmem [resolvable:$true] %s98
      %s100 = sshll.u32 %s3, 4
      %s101 = int_to_ptr.hbm [resolvable:$true] %s100
      %103 = dma.vmem_to_hbm [thread:$0]  %s99, 128, %s101, [#allocation5]
    $region33: #{sparse_linear_fused.1} parent=1 // pred_fallthru
      _
    // Predicated region
    $region34: #{sparse_linear_fused.1} parent=1 // pred_check
      _
    $region35: #{sparse_linear_fused.1} parent=1 // pred_check_branch
      %105 = sbr.rel (0) target = $region37
    $region36: #{sparse_linear_fused.1} parent=1 // pred_region
      %107 = dma.done [#allocation5], 128
    $region37: #{sparse_linear_fused.1} parent=1 // pred_fallthru
      _
    %108 = vsyncpa [#allocation4], 1
    %109 = vsyncpa [#allocation7], 1
    %110 = vsyncpa [#allocation5], 1

</llo_original>
